<compile_context>
chip_gen: v7x
topology: tpu7x:2x2x1
jax: 0.10.0
libtpu: 0.0.40
codegen_flags: <defaults>
</compile_context>

<pallas_src>
import jax
import jax.numpy as jnp
from jax import lax
from jax.experimental import pallas as pl
from jax.experimental.pallas import tpu as pltpu

# ---- static problem sizes (small, consistent with the module) ----
N, CIN, H, W = 2, 4, 16, 16
COUT = 8
KH = KW = 3
POSITION_VECTOR_LEN = 8
HW = H * W                       # 256
K_IM2COL = KH * KW * CIN         # 36
M_PIX = N * H * W                # 512
FLAT = COUT * H * W              # 2048  (backbone(x).view(n_batch, -1) feature length)


# ---------------- fused Pallas kernel ----------------
def fused_kernel(patT_ref, w36T_ref, bcol_ref, lwT_ref, lb_ref, o_ref):
    """Fused backbone (conv+bias+ReLU) + extraction layer (linear).

    patT_ref : [K_IM2COL, N*H*W]  im2col patches (tap/channel-major rows, pixel cols)
    w36T_ref : [COUT, K_IM2COL]   conv weight, flattened taps on the contraction axis
    bcol_ref : [COUT, 1]          conv bias (broadcast along the lane axis)
    lwT_ref  : [P, FLAT]          linear weight, lane-dense, cols in (c, h, w) order
    lb_ref   : [1, P]             linear bias
    o_ref    : [N, P]             output
    """
    # backbone: 3x3 same-padding conv as ONE MXU matmul (K=36), + bias + ReLU.
    featT = jnp.dot(w36T_ref[...], patT_ref[...],
                    preferred_element_type=jnp.float32)          # [COUT, N*H*W] = [8, 512]
    featT = jnp.maximum(featT + bcol_ref[...], 0.0)              # lane-dense, stays in vregs

    # Re-layout to PyTorch .view(n, -1) flatten order: feat2[n, c*HW + hw] = featT[c, n*HW + hw].
    # Lane-aligned static slices (offsets multiples of 128) + concatenate — pure vreg copies,
    # no VMEM scratch, no tiny matmuls.
    rows = []
    for n in range(N):
        parts = [featT[c:c + 1, n * HW:(n + 1) * HW] for c in range(COUT)]  # 8 x [1, 256]
        rows.append(jnp.concatenate(parts, axis=1))                          # [1, FLAT]
    feat2 = jnp.concatenate(rows, axis=0)                                    # [N, FLAT]

    # extraction layer: single K=2048 contraction against the lane-dense weight.
    out = lax.dot_general(feat2, lwT_ref[...],
                          dimension_numbers=(((1,), (1,)), ((), ())),
                          preferred_element_type=jnp.float32)                # [N, P]
    o_ref[...] = out + lb_ref[...]


# ---------------- wrapper ----------------
@jax.jit
def extra_output_extractor(x_nchw, conv_w, conv_b, lin_w, lin_b):
    """x_nchw: [N, CIN, H, W] float32.  Returns [N, POSITION_VECTOR_LEN]."""
    # one-time weight/bias layout prep (pure layout on tiny tensors)
    w36T = conv_w.reshape(K_IM2COL, COUT).T                 # [COUT, 36]
    b_col = conv_b.reshape(COUT, 1)                         # [COUT, 1]
    lwT = lin_w.T                                           # [P, FLAT] lane-dense
    lb_row = lin_b.reshape(1, POSITION_VECTOR_LEN)          # [1, P]

    # im2col built directly in [36, N*H*W] orientation (contraction axis leading):
    # transpose the 8 KiB input to channel-major, pad, take the 9 taps, stack, flatten.
    xT = jnp.transpose(x_nchw, (1, 0, 2, 3))                # [CIN, N, H, W]
    xpT = jnp.pad(xT, ((0, 0), (0, 0), (1, 1), (1, 1)))     # [CIN, N, H+2, W+2]
    taps = [xpT[:, :, dh:dh + H, dw:dw + W]
            for dh in range(KH) for dw in range(KW)]        # 9 x [CIN, N, H, W]
    patT = jnp.stack(taps, axis=0).reshape(K_IM2COL, M_PIX)  # [36, 512], row = tap*CIN+cin

    flops = 2 * COUT * K_IM2COL * M_PIX + 2 * N * FLAT * POSITION_VECTOR_LEN
    bytes_accessed = 4 * (K_IM2COL * M_PIX + COUT * K_IM2COL + COUT
                          + POSITION_VECTOR_LEN * FLAT + POSITION_VECTOR_LEN
                          + N * POSITION_VECTOR_LEN)

    fused = pl.pallas_call(
        fused_kernel,
        out_shape=jax.ShapeDtypeStruct((N, POSITION_VECTOR_LEN), jnp.float32),
        grid=(1,),
        in_specs=[
            pl.BlockSpec((K_IM2COL, M_PIX), lambda i: (0, 0)),
            pl.BlockSpec((COUT, K_IM2COL), lambda i: (0, 0)),
            pl.BlockSpec((COUT, 1), lambda i: (0, 0)),
            pl.BlockSpec((POSITION_VECTOR_LEN, FLAT), lambda i: (0, 0)),
            pl.BlockSpec((1, POSITION_VECTOR_LEN), lambda i: (0, 0)),
        ],
        out_specs=pl.BlockSpec((N, POSITION_VECTOR_LEN), lambda i: (0, 0)),
        compiler_params=pltpu.CompilerParams(dimension_semantics=("arbitrary",)),
        cost_estimate=pl.CostEstimate(flops=flops, transcendentals=0,
                                      bytes_accessed=bytes_accessed),
    )
    return fused(patT, w36T, b_col, lwT, lb_row)


# ---------------- pure-JAX reference (PyTorch NCHW semantics) ----------------
def reference(x_nchw, conv_w, conv_b, lin_w, lin_b):
    w_oihw = jnp.transpose(conv_w, (3, 2, 0, 1))  # [KH,KW,CIN,COUT] -> [COUT,CIN,KH,KW]
    y = lax.conv_general_dilated(
        x_nchw, w_oihw, window_strides=(1, 1), padding=((1, 1), (1, 1)),
        dimension_numbers=("NCHW", "OIHW", "NCHW"))
    y = jnp.maximum(y + conv_b[None, :, None, None], 0.0)
    flat = y.reshape(N, -1)
    return flat @ lin_w + lin_b[None, :]


if __name__ == "__main__":
    key = jax.random.PRNGKey(0)
    kx, kw1, kb1, kw2, kb2 = jax.random.split(key, 5)

    x = jax.random.normal(kx, (N, CIN, H, W), dtype=jnp.float32)
    conv_w = 0.1 * jax.random.normal(kw1, (KH, KW, CIN, COUT), dtype=jnp.float32)
    conv_b = 0.1 * jax.random.normal(kb1, (COUT,), dtype=jnp.float32)
    lin_w = 0.05 * jax.random.normal(kw2, (FLAT, POSITION_VECTOR_LEN), dtype=jnp.float32)
    lin_b = 0.05 * jax.random.normal(kb2, (POSITION_VECTOR_LEN,), dtype=jnp.float32)

    out = extra_output_extractor(x, conv_w, conv_b, lin_w, lin_b)
    out = jax.block_until_ready(out)

    ref = reference(x, conv_w, conv_b, lin_w, lin_b)
    assert out.shape == (N, POSITION_VECTOR_LEN)
    assert jnp.allclose(out, ref, atol=1e-4, rtol=1e-4), "mismatch vs reference"

    print("KERNEL_OK")
</pallas_src>

<mosaic_0001>
module attributes {stable_mosaic.version = 11 : i64} {
  func.func @fused_kernel(%arg0: i32, %arg1: memref<36x512xf32, #tpu.memory_space<vmem>>, %arg2: memref<8x36xf32, #tpu.memory_space<vmem>>, %arg3: memref<8x1xf32, #tpu.memory_space<vmem>>, %arg4: memref<8x2048xf32, #tpu.memory_space<vmem>>, %arg5: memref<1x8xf32, #tpu.memory_space<vmem>>, %arg6: memref<2x8xf32, #tpu.memory_space<vmem>>) attributes {dimension_semantics = [#tpu.dimension_semantics<arbitrary>], iteration_bounds = array<i64: 1>, scalar_prefetch = 0 : i64, scratch_operands = 0 : i64, tpu.core_type = #tpu.core_type<tc>, window_params = [{pipeline_mode = #tpu.pipeline_mode<synchronous>, transform_indices = @transform_0, window_bounds = array<i64: 36, 512>}, {pipeline_mode = #tpu.pipeline_mode<synchronous>, transform_indices = @transform_1, window_bounds = array<i64: 8, 36>}, {pipeline_mode = #tpu.pipeline_mode<synchronous>, transform_indices = @transform_2, window_bounds = array<i64: 8, 1>}, {pipeline_mode = #tpu.pipeline_mode<synchronous>, transform_indices = @transform_3, window_bounds = array<i64: 8, 2048>}, {pipeline_mode = #tpu.pipeline_mode<synchronous>, transform_indices = @transform_4, window_bounds = array<i64: 1, 8>}, {pipeline_mode = #tpu.pipeline_mode<synchronous>, transform_indices = @transform_5, window_bounds = array<i64: 2, 8>}]} {
    %c0 = arith.constant 0 : index
    %c0_0 = arith.constant 0 : index
    %0 = vector.load %arg2[%c0, %c0_0] : memref<8x36xf32, #tpu.memory_space<vmem>>, vector<8x36xf32>
    %c0_1 = arith.constant 0 : index
    %c0_2 = arith.constant 0 : index
    %1 = vector.load %arg1[%c0_1, %c0_2] : memref<36x512xf32, #tpu.memory_space<vmem>>, vector<36x512xf32>
    %cst = arith.constant dense<0.000000e+00> : vector<8x512xf32>
    %2 = tpu.matmul %0, %1, %cst {dimension_numbers = #tpu.dot_dimension_numbers<[1], [0], [0], [1], [0, 0, 1, 1], [], []>} : vector<8x36xf32>, vector<36x512xf32>, vector<8x512xf32> -> vector<8x512xf32>
    %c0_3 = arith.constant 0 : index
    %c0_4 = arith.constant 0 : index
    %3 = vector.load %arg3[%c0_3, %c0_4] : memref<8x1xf32, #tpu.memory_space<vmem>>, vector<8x1xf32>
    %4 = vector.broadcast %3 : vector<8x1xf32> to vector<8x512xf32>
    %5 = arith.addf %2, %4 : vector<8x512xf32>
    %cst_5 = arith.constant 0.000000e+00 : f32
    %6 = vector.broadcast %cst_5 : f32 to vector<8x512xf32>
    %7 = arith.maximumf %5, %6 : vector<8x512xf32>
    %8 = vector.extract_strided_slice %7 {offsets = [0, 0], sizes = [1, 256], strides = [1, 1]} : vector<8x512xf32> to vector<1x256xf32>
    %9 = vector.extract_strided_slice %7 {offsets = [1, 0], sizes = [1, 256], strides = [1, 1]} : vector<8x512xf32> to vector<1x256xf32>
    %10 = vector.extract_strided_slice %7 {offsets = [2, 0], sizes = [1, 256], strides = [1, 1]} : vector<8x512xf32> to vector<1x256xf32>
    %11 = vector.extract_strided_slice %7 {offsets = [3, 0], sizes = [1, 256], strides = [1, 1]} : vector<8x512xf32> to vector<1x256xf32>
    %12 = vector.extract_strided_slice %7 {offsets = [4, 0], sizes = [1, 256], strides = [1, 1]} : vector<8x512xf32> to vector<1x256xf32>
    %13 = vector.extract_strided_slice %7 {offsets = [5, 0], sizes = [1, 256], strides = [1, 1]} : vector<8x512xf32> to vector<1x256xf32>
    %14 = vector.extract_strided_slice %7 {offsets = [6, 0], sizes = [1, 256], strides = [1, 1]} : vector<8x512xf32> to vector<1x256xf32>
    %15 = vector.extract_strided_slice %7 {offsets = [7, 0], sizes = [1, 256], strides = [1, 1]} : vector<8x512xf32> to vector<1x256xf32>
    %16 = tpu.concatenate %8, %9, %10, %11, %12, %13, %14, %15 in 1 : vector<1x256xf32>, vector<1x256xf32>, vector<1x256xf32>, vector<1x256xf32>, vector<1x256xf32>, vector<1x256xf32>, vector<1x256xf32>, vector<1x256xf32> -> vector<1x2048xf32>
    %17 = vector.extract_strided_slice %7 {offsets = [0, 256], sizes = [1, 256], strides = [1, 1]} : vector<8x512xf32> to vector<1x256xf32>
    %18 = vector.extract_strided_slice %7 {offsets = [1, 256], sizes = [1, 256], strides = [1, 1]} : vector<8x512xf32> to vector<1x256xf32>
    %19 = vector.extract_strided_slice %7 {offsets = [2, 256], sizes = [1, 256], strides = [1, 1]} : vector<8x512xf32> to vector<1x256xf32>
    %20 = vector.extract_strided_slice %7 {offsets = [3, 256], sizes = [1, 256], strides = [1, 1]} : vector<8x512xf32> to vector<1x256xf32>
    %21 = vector.extract_strided_slice %7 {offsets = [4, 256], sizes = [1, 256], strides = [1, 1]} : vector<8x512xf32> to vector<1x256xf32>
    %22 = vector.extract_strided_slice %7 {offsets = [5, 256], sizes = [1, 256], strides = [1, 1]} : vector<8x512xf32> to vector<1x256xf32>
    %23 = vector.extract_strided_slice %7 {offsets = [6, 256], sizes = [1, 256], strides = [1, 1]} : vector<8x512xf32> to vector<1x256xf32>
    %24 = vector.extract_strided_slice %7 {offsets = [7, 256], sizes = [1, 256], strides = [1, 1]} : vector<8x512xf32> to vector<1x256xf32>
    %25 = tpu.concatenate %17, %18, %19, %20, %21, %22, %23, %24 in 1 : vector<1x256xf32>, vector<1x256xf32>, vector<1x256xf32>, vector<1x256xf32>, vector<1x256xf32>, vector<1x256xf32>, vector<1x256xf32>, vector<1x256xf32> -> vector<1x2048xf32>
    %26 = tpu.concatenate %16, %25 in 0 : vector<1x2048xf32>, vector<1x2048xf32> -> vector<2x2048xf32>
    %c0_6 = arith.constant 0 : index
    %c0_7 = arith.constant 0 : index
    %27 = vector.load %arg4[%c0_6, %c0_7] : memref<8x2048xf32, #tpu.memory_space<vmem>>, vector<8x2048xf32>
    %cst_8 = arith.constant dense<0.000000e+00> : vector<2x8xf32>
    %28 = tpu.matmul %26, %27, %cst_8 {dimension_numbers = #tpu.dot_dimension_numbers<[1], [1], [0], [0], [0, 0, 1, 0], [], []>} : vector<2x2048xf32>, vector<8x2048xf32>, vector<2x8xf32> -> vector<2x8xf32>
    %c0_9 = arith.constant 0 : index
    %c0_10 = arith.constant 0 : index
    %29 = vector.load %arg5[%c0_9, %c0_10] : memref<1x8xf32, #tpu.memory_space<vmem>>, vector<1x8xf32>
    %30 = vector.broadcast %29 : vector<1x8xf32> to vector<2x8xf32>
    %31 = arith.addf %28, %30 : vector<2x8xf32>
    %c0_11 = arith.constant 0 : index
    %c0_12 = arith.constant 0 : index
    %32 = vector.load %arg6[%c0_11, %c0_12] : memref<2x8xf32, #tpu.memory_space<vmem>>, vector<2x8xf32>
    tpu.vector_store %arg6[%c0_11, %c0_12], %31 {strides = array<i32>} : memref<2x8xf32, #tpu.memory_space<vmem>>, vector<2x8xf32>,
    return
  }
  func.func @transform_0(%arg0: i32) -> (i32, i32) {
    %c0_i32 = arith.constant 0 : i32
    %c0_i32_0 = arith.constant 0 : i32
    %c0_i32_1 = arith.constant 0 : i32
    return %c0_i32, %c0_i32_0 : i32, i32
  }
  func.func @transform_1(%arg0: i32) -> (i32, i32) {
    %c0_i32 = arith.constant 0 : i32
    %c0_i32_0 = arith.constant 0 : i32
    %c0_i32_1 = arith.constant 0 : i32
    return %c0_i32, %c0_i32_0 : i32, i32
  }
  func.func @transform_2(%arg0: i32) -> (i32, i32) {
    %c0_i32 = arith.constant 0 : i32
    %c0_i32_0 = arith.constant 0 : i32
    %c0_i32_1 = arith.constant 0 : i32
    return %c0_i32, %c0_i32_0 : i32, i32
  }
  func.func @transform_3(%arg0: i32) -> (i32, i32) {
    %c0_i32 = arith.constant 0 : i32
    %c0_i32_0 = arith.constant 0 : i32
    %c0_i32_1 = arith.constant 0 : i32
    return %c0_i32, %c0_i32_0 : i32, i32
  }
  func.func @transform_4(%arg0: i32) -> (i32, i32) {
    %c0_i32 = arith.constant 0 : i32
    %c0_i32_0 = arith.constant 0 : i32
    %c0_i32_1 = arith.constant 0 : i32
    return %c0_i32, %c0_i32_0 : i32, i32
  }
  func.func @transform_5(%arg0: i32) -> (i32, i32) {
    %c0_i32 = arith.constant 0 : i32
    %c0_i32_0 = arith.constant 0 : i32
    %c0_i32_1 = arith.constant 0 : i32
    return %c0_i32, %c0_i32_0 : i32, i32
  }
}

</mosaic_0001>

<llo_original>
// kernel: extra_output_extractor.1
$region0: #{extra_output_extractor.1}
  #allocation0 [shape = 'u32[]', space=smem, size = 0x4, offset = 0x4, fixed_abs, tag = 'smem constant byte address 0x4 - core index']
  #allocation1 [shape = 'u32[144,128]{1,0:T(1,128)}', space=vmem, size = 0x12000, scoped, tag = 'internal scratch']
  %s0 = inlined_call_operand.vmem [shape: f32[36,512], index: 0, kind: input, shape index: {}]
  %s1 = inlined_call_operand.vmem [shape: f32[8,36], index: 1, kind: input, shape index: {}]
  %s2 = inlined_call_operand.vmem [shape: f32[8,1], index: 2, kind: input, shape index: {}]
  %s3 = inlined_call_operand.vmem [shape: f32[8,2048], index: 3, kind: input, shape index: {}]
  %s4 = inlined_call_operand.vmem [shape: f32[1,8], index: 4, kind: input, shape index: {}]
  %s5 = inlined_call_operand.hbm [shape: f32[2,8], index: 5, kind: output, shape index: {}]
  %s6 = sld [smem:[#allocation0]]
  $region30: #{extra_output_extractor.1} parent=0
    _
  %s8 = ssub.s32 1, %s6
  %s9 = scalar_select 0, %s8, %s6
  $region1: #{extra_output_extractor.1} parent=0
    #allocation2 [shape = 'u8[1024]{0}', space=vmem, size = 0x400, scoped, tag = 'output window, operand 0, single buffered']
    #allocation3 [shape = 's32[1]{0}', space=sflag, size = 0x4, scoped, tag = 'scoped memory for extra_output_extractor.1']
    %10 = vsyncpa [#allocation3], 0
    // Predicated region
    $region2: #{extra_output_extractor.1} parent=1 // pred_check
      _
    $region3: #{extra_output_extractor.1} parent=1 // pred_check_branch
      %12 = sbr.rel (0) target = $region5
    $region4: #{extra_output_extractor.1} parent=1 // pred_region
      _
    $region5: #{extra_output_extractor.1} parent=1 // pred_fallthru
      _
    // Predicated region
    $region6: #{extra_output_extractor.1} parent=1 // pred_check
      _
    $region7: #{extra_output_extractor.1} parent=1 // pred_check_branch
      %14 = sbr.rel (0) target = $region9
    $region8: #{extra_output_extractor.1} parent=1 // pred_region
      _
    $region9: #{extra_output_extractor.1} parent=1 // pred_fallthru
      _
    // Predicated region
    $region10: #{extra_output_extractor.1} parent=1 // pred_check
      _
    $region11: #{extra_output_extractor.1} parent=1 // pred_check_branch
      %16 = sbr.rel (0) target = $region13
    $region12: #{extra_output_extractor.1} parent=1 // pred_region
      _
    $region13: #{extra_output_extractor.1} parent=1 // pred_fallthru
      _
    // Predicated region
    $region14: #{extra_output_extractor.1} parent=1 // pred_check
      _
    $region15: #{extra_output_extractor.1} parent=1 // pred_check_branch
      %18 = sbr.rel (0) target = $region17
    $region16: #{extra_output_extractor.1} parent=1 // pred_region
      _
    $region17: #{extra_output_extractor.1} parent=1 // pred_fallthru
      _
    // Predicated region
    $region18: #{extra_output_extractor.1} parent=1 // pred_check
      _
    $region19: #{extra_output_extractor.1} parent=1 // pred_check_branch
      %20 = sbr.rel (0) target = $region21
    $region20: #{extra_output_extractor.1} parent=1 // pred_region
      _
    $region21: #{extra_output_extractor.1} parent=1 // pred_fallthru
      _
    %v21 = vld [vmem:[%s1] sm:$0xff]
    %v22 = vld [vmem:[%s0] sm:$0xff]
    %v23 = vld [vmem:[%s0 + $0x8] sm:$0xff]
    %v24 = vld [vmem:[%s0 + $0x10] sm:$0xff]
    %v25 = vld [vmem:[%s0 + $0x18] sm:$0xff]
    %v26 = vld [vmem:[%s0 + $0x20] sm:$0xff]
    %v27 = vld [vmem:[%s0 + $0x28] sm:$0xff]
    %v28 = vld [vmem:[%s0 + $0x30] sm:$0xff]
    %v29 = vld [vmem:[%s0 + $0x38] sm:$0xff]
    %v30 = vld [vmem:[%s0 + $0x40] sm:$0xff]
    %v31 = vld [vmem:[%s0 + $0x48] sm:$0xff]
    %v32 = vld [vmem:[%s0 + $0x50] sm:$0xff]
    %v33 = vld [vmem:[%s0 + $0x58] sm:$0xff]
    %v34 = vld [vmem:[%s0 + $0x60] sm:$0xff]
    %v35 = vld [vmem:[%s0 + $0x68] sm:$0xff]
    %v36 = vld [vmem:[%s0 + $0x70] sm:$0xff]
    %v37 = vld [vmem:[%s0 + $0x78] sm:$0xff]
    %v38 = vld [vmem:[%s0 + $0x80] sm:$0xf]
    %v39 = vld [vmem:[%s0 + $0x88] sm:$0xf]
    %v40 = vld [vmem:[%s0 + $0x90] sm:$0xf]
    %v41 = vld [vmem:[%s0 + $0x98] sm:$0xf]
    %v42 = vld [vmem:[%s2] sm:$0xff]
    %44 = vset.pattern.permute.xlu0 0
    %45 = vperm.xlu0 %44, %v42
    %v46 = vpop.permute.xlu0 %45
    %vm48 = vcmask 293888
    %v50 = vsel %vm48, %v21, 0
    %vm52 = vcmask 1043456
    %v54 = vsel %vm52, %v38, 0
    %v57 = vsel %vm52, %v39, 0
    %v60 = vsel %vm52, %v40, 0
    %v63 = vsel %vm52, %v41, 0
    %65 = vmatprep.subr.mxu0 %v23
    %66 = vmatpush1.msra.mxu0 %v22
    %67 = vmatprep.subr.mxu0 %v27
    %68 = vmatpush1.msra.mxu0 %v26
    %69 = vmatprep.subr.mxu0 %v31
    %70 = vmatpush1.msra.mxu0 %v30
    %71 = vmatprep.subr.mxu0 %v35
    %72 = vmatpush1.msra.mxu0 %v34
    %73 = vmatprep.subr.mxu0 %v57
    %74 = vmatpush1.msra.mxu0 %v54
    %75 = vmatprep.subr.mxu0 0.0
    %76 = vmatpush1.msra.mxu0 0.0
    %77 = vmatprep.subr.mxu0 0.0
    %78 = vmatpush1.msra.mxu0 0.0
    %79 = vmatprep.subr.mxu0 0.0
    %80 = vmatpush1.msra.mxu0 0.0
    %81 = vmatprep.subr.mxu0 0.0
    %82 = vmatpush1.msra.mxu0 0.0
    %83 = vmatprep.subr.mxu0 0.0
    %84 = vmatpush1.msra.mxu0 0.0
    %85 = vmatprep.subr.mxu0 0.0
    %86 = vmatpush1.msra.mxu0 0.0
    %87 = vmatprep.subr.mxu0 0.0
    %88 = vmatpush1.msra.mxu0 0.0
    %89 = vmatprep.subr.mxu0 0.0
    %90 = vmatpush1.msra.mxu0 0.0
    %91 = vmatprep.subr.mxu0 0.0
    %92 = vmatpush1.msra.mxu0 0.0
    %93 = vmatprep.subr.mxu0 0.0
    %94 = vmatpush1.msra.mxu0 0.0
    %95 = vmatprep.subr.mxu0 0.0
    %96 = vmatpush1.msra.mxu0 0.0
    %97 = vmatprep.subr.mxu0 0.0
    %98 = vmatpush1.msra.mxu0 0.0
    %99 = vmatprep.subr.mxu0 0.0
    %100 = vmatpush1.msra.mxu0 0.0
    %101 = vmatprep.subr.mxu0 0.0
    %102 = vmatpush1.msra.mxu0 0.0
    %103 = vmatprep.subr.mxu0 0.0
    %104 = vmatpush1.msra.mxu0 0.0
    %105 = vmatprep.subr.mxu0 0.0
    %106 = vmatpush1.msra.mxu0 0.0
    %107 = vmatprep.subr.mxu0 0.0
    %108 = vmatpush1.msra.mxu0 0.0
    %109 = vmatprep.subr.mxu0 0.0
    %110 = vmatpush1.msra.mxu0 0.0
    %111 = vmatprep.subr.mxu0 0.0
    %112 = vmatpush1.msra.mxu0 0.0
    %113 = vmatprep.subr.mxu0 0.0
    %114 = vmatpush1.msra.mxu0 0.0
    %115 = vmatprep.subr.mxu0 0.0
    %116 = vmatpush1.msra.mxu0 0.0
    %117 = vmatprep.subr.mxu0 0.0
    %118 = vmatpush1.msra.mxu0 0.0
    %119 = vmatprep.subr.mxu0 0.0
    %120 = vmatpush1.msra.mxu0 0.0
    %121 = vmatprep.subr.mxu0 0.0
    %122 = vmatpush1.msra.mxu0 0.0
    %123 = vmatprep.subr.mxu0 0.0
    %124 = vmatpush1.msra.mxu0 0.0
    %125 = vmatprep.subr.mxu0 0.0
    %126 = vmatpush1.msra.mxu0 0.0
    %127 = vmatprep.subr.mxu0 0.0
    %128 = vmatpush1.msra.mxu0 0.0
    %129 = vmatprep.mubr.f32.mxu0 0.0
    %130 = vmatmul.mubr.f32.gmra.mrb[0].mxu0 %v50
    %v131 = vpop.f32.mrb[0].mxu0
    %v132 = vadd.f32 %v46, %v131
    %v133 = vpop.f32.mrb[0].mxu0
    %v134 = vadd.f32 %v46, %v133
    %135 = vdwg.mxu0
    %136 = vmatprep.subr.mxu0 %v25
    %137 = vmatpush1.msra.mxu0 %v24
    %138 = vmatprep.subr.mxu0 %v29
    %139 = vmatpush1.msra.mxu0 %v28
    %140 = vmatprep.subr.mxu0 %v33
    %141 = vmatpush1.msra.mxu0 %v32
    %142 = vmatprep.subr.mxu0 %v37
    %143 = vmatpush1.msra.mxu0 %v36
    %144 = vmatprep.subr.mxu0 %v63
    %145 = vmatpush1.msra.mxu0 %v60
    %146 = vmatprep.subr.mxu0 0.0
    %147 = vmatpush1.msra.mxu0 0.0
    %148 = vmatprep.subr.mxu0 0.0
    %149 = vmatpush1.msra.mxu0 0.0
    %150 = vmatprep.subr.mxu0 0.0
    %151 = vmatpush1.msra.mxu0 0.0
    %152 = vmatprep.subr.mxu0 0.0
    %153 = vmatpush1.msra.mxu0 0.0
    %154 = vmatprep.subr.mxu0 0.0
    %155 = vmatpush1.msra.mxu0 0.0
    %156 = vmatprep.subr.mxu0 0.0
    %157 = vmatpush1.msra.mxu0 0.0
    %158 = vmatprep.subr.mxu0 0.0
    %159 = vmatpush1.msra.mxu0 0.0
    %160 = vmatprep.subr.mxu0 0.0
    %161 = vmatpush1.msra.mxu0 0.0
    %162 = vmatprep.subr.mxu0 0.0
    %163 = vmatpush1.msra.mxu0 0.0
    %164 = vmatprep.subr.mxu0 0.0
    %165 = vmatpush1.msra.mxu0 0.0
    %166 = vmatprep.subr.mxu0 0.0
    %167 = vmatpush1.msra.mxu0 0.0
    %168 = vmatprep.subr.mxu0 0.0
    %169 = vmatpush1.msra.mxu0 0.0
    %170 = vmatprep.subr.mxu0 0.0
    %171 = vmatpush1.msra.mxu0 0.0
    %172 = vmatprep.subr.mxu0 0.0
    %173 = vmatpush1.msra.mxu0 0.0
    %174 = vmatprep.subr.mxu0 0.0
    %175 = vmatpush1.msra.mxu0 0.0
    %176 = vmatprep.subr.mxu0 0.0
    %177 = vmatpush1.msra.mxu0 0.0
    %178 = vmatprep.subr.mxu0 0.0
    %179 = vmatpush1.msra.mxu0 0.0
    %180 = vmatprep.subr.mxu0 0.0
    %181 = vmatpush1.msra.mxu0 0.0
    %182 = vmatprep.subr.mxu0 0.0
    %183 = vmatpush1.msra.mxu0 0.0
    %184 = vmatprep.subr.mxu0 0.0
    %185 = vmatpush1.msra.mxu0 0.0
    %186 = vmatprep.subr.mxu0 0.0
    %187 = vmatpush1.msra.mxu0 0.0
    %188 = vmatprep.subr.mxu0 0.0
    %189 = vmatpush1.msra.mxu0 0.0
    %190 = vmatprep.subr.mxu0 0.0
    %191 = vmatpush1.msra.mxu0 0.0
    %192 = vmatprep.subr.mxu0 0.0
    %193 = vmatpush1.msra.mxu0 0.0
    %194 = vmatprep.subr.mxu0 0.0
    %195 = vmatpush1.msra.mxu0 0.0
    %196 = vmatprep.subr.mxu0 0.0
    %197 = vmatpush1.msra.mxu0 0.0
    %198 = vmatprep.subr.mxu0 0.0
    %199 = vmatpush1.msra.mxu0 0.0
    %200 = vmatprep.mubr.f32.mxu0 0.0
    %201 = vmatmul.mubr.f32.gmra.mrb[0].mxu0 %v50
    %v202 = vpop.f32.mrb[0].mxu0
    %v203 = vadd.f32 %v46, %v202
    %v204 = vpop.f32.mrb[0].mxu0
    %v205 = vadd.f32 %v46, %v204
    %206 = vdwg.mxu0
    %v207 = vmax.f32 %v132, 0.0
    %v208 = vmax.f32 %v134, 0.0
    %v209 = vmax.f32 %v203, 0.0
    %v210 = vmax.f32 %v205, 0.0
    %v213 = vrot.slane %v207, 1
    %v214 = vrot.slane %v208, 1
    %v217 = vrot.slane %v207, 2
    %v218 = vrot.slane %v208, 2
    %v221 = vrot.slane %v207, 3
    %v222 = vrot.slane %v208, 3
    %v225 = vrot.slane %v207, 4
    %v226 = vrot.slane %v208, 4
    %v229 = vrot.slane %v207, 5
    %v230 = vrot.slane %v208, 5
    %v233 = vrot.slane %v207, 6
    %v234 = vrot.slane %v208, 6
    %v237 = vrot.slane %v207, 7
    %v238 = vrot.slane %v208, 7
    %v243 = vrot.slane %v209, 1
    %v244 = vrot.slane %v210, 1
    %v245 = vrot.slane %v209, 2
    %v246 = vrot.slane %v210, 2
    %v247 = vrot.slane %v209, 3
    %v248 = vrot.slane %v210, 3
    %v249 = vrot.slane %v209, 4
    %v250 = vrot.slane %v210, 4
    %v251 = vrot.slane %v209, 5
    %v252 = vrot.slane %v210, 5
    %v253 = vrot.slane %v209, 6
    %v254 = vrot.slane %v210, 6
    %v255 = vrot.slane %v209, 7
    %v256 = vrot.slane %v210, 7
    %v257 = vrot.slane %v243, 7
    %v258 = vrot.slane %v244, 7
    %v259 = vrot.slane %v245, 7
    %v260 = vrot.slane %v246, 7
    %v261 = vrot.slane %v247, 7
    %v262 = vrot.slane %v248, 7
    %v263 = vrot.slane %v249, 7
    %v264 = vrot.slane %v250, 7
    %v265 = vrot.slane %v251, 7
    %v266 = vrot.slane %v252, 7
    %v267 = vrot.slane %v253, 7
    %v268 = vrot.slane %v254, 7
    %v269 = vrot.slane %v255, 7
    %v270 = vrot.slane %v256, 7
    %vm287 = vcmask 1040384
    %v288 = vsel %vm287, %v207, %v255
    %v289 = vsel %vm287, %v208, %v256
    %v290 = vsel %vm287, %v213, %v257
    %v291 = vsel %vm287, %v214, %v258
    %v292 = vsel %vm287, %v217, %v259
    %v293 = vsel %vm287, %v218, %v260
    %v294 = vsel %vm287, %v221, %v261
    %v295 = vsel %vm287, %v222, %v262
    %v296 = vsel %vm287, %v225, %v263
    %v297 = vsel %vm287, %v226, %v264
    %v298 = vsel %vm287, %v229, %v265
    %v299 = vsel %vm287, %v230, %v266
    %v300 = vsel %vm287, %v233, %v267
    %v301 = vsel %vm287, %v234, %v268
    %v302 = vsel %vm287, %v237, %v269
    %v303 = vsel %vm287, %v238, %v270
    %v304 = vld [vmem:[%s3] sm:$0xff]
    %v305 = vld [vmem:[%s3 + $0x8] sm:$0xff]
    %v306 = vld [vmem:[%s3 + $0x10] sm:$0xff]
    %v307 = vld [vmem:[%s3 + $0x18] sm:$0xff]
    %v308 = vld [vmem:[%s3 + $0x20] sm:$0xff]
    %v309 = vld [vmem:[%s3 + $0x28] sm:$0xff]
    %v310 = vld [vmem:[%s3 + $0x30] sm:$0xff]
    %v311 = vld [vmem:[%s3 + $0x38] sm:$0xff]
    %v312 = vld [vmem:[%s3 + $0x40] sm:$0xff]
    %v313 = vld [vmem:[%s3 + $0x48] sm:$0xff]
    %v314 = vld [vmem:[%s3 + $0x50] sm:$0xff]
    %v315 = vld [vmem:[%s3 + $0x58] sm:$0xff]
    %v316 = vld [vmem:[%s3 + $0x60] sm:$0xff]
    %v317 = vld [vmem:[%s3 + $0x68] sm:$0xff]
    %v318 = vld [vmem:[%s3 + $0x70] sm:$0xff]
    %v319 = vld [vmem:[%s3 + $0x78] sm:$0xff]
    %v320 = vld [vmem:[%s4] sm:$0x1]
    %v322 = vlaneseq
    %v323 = vshrl.u32 %v322, 7
    %v324 = vsub.s32 0, %v323
    %v325 = vrot.slane %v320, %v324
    %327 = vmatprep.subr.mxu0 %v305
    %328 = vmatpush1.xpose.msra.mxu0 %v304
    %329 = vmatprep.subr.mxu0 0.0
    %330 = vmatpush1.xpose.msra.mxu0 0.0
    %331 = vmatprep.subr.mxu0 0.0
    %332 = vmatpush1.xpose.msra.mxu0 0.0
    %333 = vmatprep.subr.mxu0 0.0
    %334 = vmatpush1.xpose.msra.mxu0 0.0
    %335 = vmatprep.subr.mxu0 0.0
    %336 = vmatpush1.xpose.msra.mxu0 0.0
    %337 = vmatprep.subr.mxu0 0.0
    %338 = vmatpush1.xpose.msra.mxu0 0.0
    %339 = vmatprep.subr.mxu0 0.0
    %340 = vmatpush1.xpose.msra.mxu0 0.0
    %341 = vmatprep.subr.mxu0 0.0
    %342 = vmatpush1.xpose.msra.mxu0 0.0
    %343 = vmatprep.subr.mxu0 0.0
    %344 = vmatpush1.xpose.msra.mxu0 0.0
    %345 = vmatprep.subr.mxu0 0.0
    %346 = vmatpush1.xpose.msra.mxu0 0.0
    %347 = vmatprep.subr.mxu0 0.0
    %348 = vmatpush1.xpose.msra.mxu0 0.0
    %349 = vmatprep.subr.mxu0 0.0
    %350 = vmatpush1.xpose.msra.mxu0 0.0
    %351 = vmatprep.subr.mxu0 0.0
    %352 = vmatpush1.xpose.msra.mxu0 0.0
    %353 = vmatprep.subr.mxu0 0.0
    %354 = vmatpush1.xpose.msra.mxu0 0.0
    %355 = vmatprep.subr.mxu0 0.0
    %356 = vmatpush1.xpose.msra.mxu0 0.0
    %357 = vmatprep.subr.mxu0 0.0
    %358 = vmatpush1.xpose.msra.mxu0 0.0
    %359 = vmatprep.subr.mxu0 0.0
    %360 = vmatpush1.xpose.msra.mxu0 0.0
    %361 = vmatprep.subr.mxu0 0.0
    %362 = vmatpush1.xpose.msra.mxu0 0.0
    %363 = vmatprep.subr.mxu0 0.0
    %364 = vmatpush1.xpose.msra.mxu0 0.0
    %365 = vmatprep.subr.mxu0 0.0
    %366 = vmatpush1.xpose.msra.mxu0 0.0
    %367 = vmatprep.subr.mxu0 0.0
    %368 = vmatpush1.xpose.msra.mxu0 0.0
    %369 = vmatprep.subr.mxu0 0.0
    %370 = vmatpush1.xpose.msra.mxu0 0.0
    %371 = vmatprep.subr.mxu0 0.0
    %372 = vmatpush1.xpose.msra.mxu0 0.0
    %373 = vmatprep.subr.mxu0 0.0
    %374 = vmatpush1.xpose.msra.mxu0 0.0
    %375 = vmatprep.subr.mxu0 0.0
    %376 = vmatpush1.xpose.msra.mxu0 0.0
    %377 = vmatprep.subr.mxu0 0.0
    %378 = vmatpush1.xpose.msra.mxu0 0.0
    %379 = vmatprep.subr.mxu0 0.0
    %380 = vmatpush1.xpose.msra.mxu0 0.0
    %381 = vmatprep.subr.mxu0 0.0
    %382 = vmatpush1.xpose.msra.mxu0 0.0
    %383 = vmatprep.subr.mxu0 0.0
    %384 = vmatpush1.xpose.msra.mxu0 0.0
    %385 = vmatprep.subr.mxu0 0.0
    %386 = vmatpush1.xpose.msra.mxu0 0.0
    %387 = vmatprep.subr.mxu0 0.0
    %388 = vmatpush1.xpose.msra.mxu0 0.0
    %389 = vmatprep.subr.mxu0 0.0
    %390 = vmatpush1.xpose.msra.mxu0 0.0
    %391 = vmatprep.mubr.f32.mxu0 %v289
    %392 = vmatmul.mubr.f32.gmra.mrb[0].mxu0 %v288
    %v393 = vpop.f32.mrb[0].mxu0
    %v394 = vadd.f32 %v325, %v393
    %v395 = vpop.f32.mrb[0].mxu0
    %396 = vdwg.mxu0
    %397 = vmatprep.subr.mxu0 %v307
    %398 = vmatpush1.xpose.msra.mxu0 %v306
    %399 = vmatprep.subr.mxu0 0.0
    %400 = vmatpush1.xpose.msra.mxu0 0.0
    %401 = vmatprep.subr.mxu0 0.0
    %402 = vmatpush1.xpose.msra.mxu0 0.0
    %403 = vmatprep.subr.mxu0 0.0
    %404 = vmatpush1.xpose.msra.mxu0 0.0
    %405 = vmatprep.subr.mxu0 0.0
    %406 = vmatpush1.xpose.msra.mxu0 0.0
    %407 = vmatprep.subr.mxu0 0.0
    %408 = vmatpush1.xpose.msra.mxu0 0.0
    %409 = vmatprep.subr.mxu0 0.0
    %410 = vmatpush1.xpose.msra.mxu0 0.0
    %411 = vmatprep.subr.mxu0 0.0
    %412 = vmatpush1.xpose.msra.mxu0 0.0
    %413 = vmatprep.subr.mxu0 0.0
    %414 = vmatpush1.xpose.msra.mxu0 0.0
    %415 = vmatprep.subr.mxu0 0.0
    %416 = vmatpush1.xpose.msra.mxu0 0.0
    %417 = vmatprep.subr.mxu0 0.0
    %418 = vmatpush1.xpose.msra.mxu0 0.0
    %419 = vmatprep.subr.mxu0 0.0
    %420 = vmatpush1.xpose.msra.mxu0 0.0
    %421 = vmatprep.subr.mxu0 0.0
    %422 = vmatpush1.xpose.msra.mxu0 0.0
    %423 = vmatprep.subr.mxu0 0.0
    %424 = vmatpush1.xpose.msra.mxu0 0.0
    %425 = vmatprep.subr.mxu0 0.0
    %426 = vmatpush1.xpose.msra.mxu0 0.0
    %427 = vmatprep.subr.mxu0 0.0
    %428 = vmatpush1.xpose.msra.mxu0 0.0
    %429 = vmatprep.subr.mxu0 0.0
    %430 = vmatpush1.xpose.msra.mxu0 0.0
    %431 = vmatprep.subr.mxu0 0.0
    %432 = vmatpush1.xpose.msra.mxu0 0.0
    %433 = vmatprep.subr.mxu0 0.0
    %434 = vmatpush1.xpose.msra.mxu0 0.0
    %435 = vmatprep.subr.mxu0 0.0
    %436 = vmatpush1.xpose.msra.mxu0 0.0
    %437 = vmatprep.subr.mxu0 0.0
    %438 = vmatpush1.xpose.msra.mxu0 0.0
    %439 = vmatprep.subr.mxu0 0.0
    %440 = vmatpush1.xpose.msra.mxu0 0.0
    %441 = vmatprep.subr.mxu0 0.0
    %442 = vmatpush1.xpose.msra.mxu0 0.0
    %443 = vmatprep.subr.mxu0 0.0
    %444 = vmatpush1.xpose.msra.mxu0 0.0
    %445 = vmatprep.subr.mxu0 0.0
    %446 = vmatpush1.xpose.msra.mxu0 0.0
    %447 = vmatprep.subr.mxu0 0.0
    %448 = vmatpush1.xpose.msra.mxu0 0.0
    %449 = vmatprep.subr.mxu0 0.0
    %450 = vmatpush1.xpose.msra.mxu0 0.0
    %451 = vmatprep.subr.mxu0 0.0
    %452 = vmatpush1.xpose.msra.mxu0 0.0
    %453 = vmatprep.subr.mxu0 0.0
    %454 = vmatpush1.xpose.msra.mxu0 0.0
    %455 = vmatprep.subr.mxu0 0.0
    %456 = vmatpush1.xpose.msra.mxu0 0.0
    %457 = vmatprep.subr.mxu0 0.0
    %458 = vmatpush1.xpose.msra.mxu0 0.0
    %459 = vmatprep.subr.mxu0 0.0
    %460 = vmatpush1.xpose.msra.mxu0 0.0
    %461 = vmatprep.mubr.f32.mxu0 %v291
    %462 = vmatmul.mubr.f32.gmra.mrb[0].mxu0 %v290
    %v463 = vpop.f32.mrb[0].mxu0
    %v464 = vadd.f32 %v394, %v463
    %v465 = vpop.f32.mrb[0].mxu0
    %466 = vdwg.mxu0
    %467 = vmatprep.subr.mxu0 %v309
    %468 = vmatpush1.xpose.msra.mxu0 %v308
    %469 = vmatprep.subr.mxu0 0.0
    %470 = vmatpush1.xpose.msra.mxu0 0.0
    %471 = vmatprep.subr.mxu0 0.0
    %472 = vmatpush1.xpose.msra.mxu0 0.0
    %473 = vmatprep.subr.mxu0 0.0
    %474 = vmatpush1.xpose.msra.mxu0 0.0
    %475 = vmatprep.subr.mxu0 0.0
    %476 = vmatpush1.xpose.msra.mxu0 0.0
    %477 = vmatprep.subr.mxu0 0.0
    %478 = vmatpush1.xpose.msra.mxu0 0.0
    %479 = vmatprep.subr.mxu0 0.0
    %480 = vmatpush1.xpose.msra.mxu0 0.0
    %481 = vmatprep.subr.mxu0 0.0
    %482 = vmatpush1.xpose.msra.mxu0 0.0
    %483 = vmatprep.subr.mxu0 0.0
    %484 = vmatpush1.xpose.msra.mxu0 0.0
    %485 = vmatprep.subr.mxu0 0.0
    %486 = vmatpush1.xpose.msra.mxu0 0.0
    %487 = vmatprep.subr.mxu0 0.0
    %488 = vmatpush1.xpose.msra.mxu0 0.0
    %489 = vmatprep.subr.mxu0 0.0
    %490 = vmatpush1.xpose.msra.mxu0 0.0
    %491 = vmatprep.subr.mxu0 0.0
    %492 = vmatpush1.xpose.msra.mxu0 0.0
    %493 = vmatprep.subr.mxu0 0.0
    %494 = vmatpush1.xpose.msra.mxu0 0.0
    %495 = vmatprep.subr.mxu0 0.0
    %496 = vmatpush1.xpose.msra.mxu0 0.0
    %497 = vmatprep.subr.mxu0 0.0
    %498 = vmatpush1.xpose.msra.mxu0 0.0
    %499 = vmatprep.subr.mxu0 0.0
    %500 = vmatpush1.xpose.msra.mxu0 0.0
    %501 = vmatprep.subr.mxu0 0.0
    %502 = vmatpush1.xpose.msra.mxu0 0.0
    %503 = vmatprep.subr.mxu0 0.0
    %504 = vmatpush1.xpose.msra.mxu0 0.0
    %505 = vmatprep.subr.mxu0 0.0
    %506 = vmatpush1.xpose.msra.mxu0 0.0
    %507 = vmatprep.subr.mxu0 0.0
    %508 = vmatpush1.xpose.msra.mxu0 0.0
    %509 = vmatprep.subr.mxu0 0.0
    %510 = vmatpush1.xpose.msra.mxu0 0.0
    %511 = vmatprep.subr.mxu0 0.0
    %512 = vmatpush1.xpose.msra.mxu0 0.0
    %513 = vmatprep.subr.mxu0 0.0
    %514 = vmatpush1.xpose.msra.mxu0 0.0
    %515 = vmatprep.subr.mxu0 0.0
    %516 = vmatpush1.xpose.msra.mxu0 0.0
    %517 = vmatprep.subr.mxu0 0.0
    %518 = vmatpush1.xpose.msra.mxu0 0.0
    %519 = vmatprep.subr.mxu0 0.0
    %520 = vmatpush1.xpose.msra.mxu0 0.0
    %521 = vmatprep.subr.mxu0 0.0
    %522 = vmatpush1.xpose.msra.mxu0 0.0
    %523 = vmatprep.subr.mxu0 0.0
    %524 = vmatpush1.xpose.msra.mxu0 0.0
    %525 = vmatprep.subr.mxu0 0.0
    %526 = vmatpush1.xpose.msra.mxu0 0.0
    %527 = vmatprep.subr.mxu0 0.0
    %528 = vmatpush1.xpose.msra.mxu0 0.0
    %529 = vmatprep.subr.mxu0 0.0
    %530 = vmatpush1.xpose.msra.mxu0 0.0
    %531 = vmatprep.mubr.f32.mxu0 %v293
    %532 = vmatmul.mubr.f32.gmra.mrb[0].mxu0 %v292
    %v533 = vpop.f32.mrb[0].mxu0
    %v534 = vadd.f32 %v464, %v533
    %v535 = vpop.f32.mrb[0].mxu0
    %536 = vdwg.mxu0
    %537 = vmatprep.subr.mxu0 %v311
    %538 = vmatpush1.xpose.msra.mxu0 %v310
    %539 = vmatprep.subr.mxu0 0.0
    %540 = vmatpush1.xpose.msra.mxu0 0.0
    %541 = vmatprep.subr.mxu0 0.0
    %542 = vmatpush1.xpose.msra.mxu0 0.0
    %543 = vmatprep.subr.mxu0 0.0
    %544 = vmatpush1.xpose.msra.mxu0 0.0
    %545 = vmatprep.subr.mxu0 0.0
    %546 = vmatpush1.xpose.msra.mxu0 0.0
    %547 = vmatprep.subr.mxu0 0.0
    %548 = vmatpush1.xpose.msra.mxu0 0.0
    %549 = vmatprep.subr.mxu0 0.0
    %550 = vmatpush1.xpose.msra.mxu0 0.0
    %551 = vmatprep.subr.mxu0 0.0
    %552 = vmatpush1.xpose.msra.mxu0 0.0
    %553 = vmatprep.subr.mxu0 0.0
    %554 = vmatpush1.xpose.msra.mxu0 0.0
    %555 = vmatprep.subr.mxu0 0.0
    %556 = vmatpush1.xpose.msra.mxu0 0.0
    %557 = vmatprep.subr.mxu0 0.0
    %558 = vmatpush1.xpose.msra.mxu0 0.0
    %559 = vmatprep.subr.mxu0 0.0
    %560 = vmatpush1.xpose.msra.mxu0 0.0
    %561 = vmatprep.subr.mxu0 0.0
    %562 = vmatpush1.xpose.msra.mxu0 0.0
    %563 = vmatprep.subr.mxu0 0.0
    %564 = vmatpush1.xpose.msra.mxu0 0.0
    %565 = vmatprep.subr.mxu0 0.0
    %566 = vmatpush1.xpose.msra.mxu0 0.0
    %567 = vmatprep.subr.mxu0 0.0
    %568 = vmatpush1.xpose.msra.mxu0 0.0
    %569 = vmatprep.subr.mxu0 0.0
    %570 = vmatpush1.xpose.msra.mxu0 0.0
    %571 = vmatprep.subr.mxu0 0.0
    %572 = vmatpush1.xpose.msra.mxu0 0.0
    %573 = vmatprep.subr.mxu0 0.0
    %574 = vmatpush1.xpose.msra.mxu0 0.0
    %575 = vmatprep.subr.mxu0 0.0
    %576 = vmatpush1.xpose.msra.mxu0 0.0
    %577 = vmatprep.subr.mxu0 0.0
    %578 = vmatpush1.xpose.msra.mxu0 0.0
    %579 = vmatprep.subr.mxu0 0.0
    %580 = vmatpush1.xpose.msra.mxu0 0.0
    %581 = vmatprep.subr.mxu0 0.0
    %582 = vmatpush1.xpose.msra.mxu0 0.0
    %583 = vmatprep.subr.mxu0 0.0
    %584 = vmatpush1.xpose.msra.mxu0 0.0
    %585 = vmatprep.subr.mxu0 0.0
    %586 = vmatpush1.xpose.msra.mxu0 0.0
    %587 = vmatprep.subr.mxu0 0.0
    %588 = vmatpush1.xpose.msra.mxu0 0.0
    %589 = vmatprep.subr.mxu0 0.0
    %590 = vmatpush1.xpose.msra.mxu0 0.0
    %591 = vmatprep.subr.mxu0 0.0
    %592 = vmatpush1.xpose.msra.mxu0 0.0
    %593 = vmatprep.subr.mxu0 0.0
    %594 = vmatpush1.xpose.msra.mxu0 0.0
    %595 = vmatprep.subr.mxu0 0.0
    %596 = vmatpush1.xpose.msra.mxu0 0.0
    %597 = vmatprep.subr.mxu0 0.0
    %598 = vmatpush1.xpose.msra.mxu0 0.0
    %599 = vmatprep.subr.mxu0 0.0
    %600 = vmatpush1.xpose.msra.mxu0 0.0
    %601 = vmatprep.mubr.f32.mxu0 %v295
    %602 = vmatmul.mubr.f32.gmra.mrb[0].mxu0 %v294
    %v603 = vpop.f32.mrb[0].mxu0
    %v604 = vadd.f32 %v534, %v603
    %v605 = vpop.f32.mrb[0].mxu0
    %606 = vdwg.mxu0
    %607 = vmatprep.subr.mxu0 %v313
    %608 = vmatpush1.xpose.msra.mxu0 %v312
    %609 = vmatprep.subr.mxu0 0.0
    %610 = vmatpush1.xpose.msra.mxu0 0.0
    %611 = vmatprep.subr.mxu0 0.0
    %612 = vmatpush1.xpose.msra.mxu0 0.0
    %613 = vmatprep.subr.mxu0 0.0
    %614 = vmatpush1.xpose.msra.mxu0 0.0
    %615 = vmatprep.subr.mxu0 0.0
    %616 = vmatpush1.xpose.msra.mxu0 0.0
    %617 = vmatprep.subr.mxu0 0.0
    %618 = vmatpush1.xpose.msra.mxu0 0.0
    %619 = vmatprep.subr.mxu0 0.0
    %620 = vmatpush1.xpose.msra.mxu0 0.0
    %621 = vmatprep.subr.mxu0 0.0
    %622 = vmatpush1.xpose.msra.mxu0 0.0
    %623 = vmatprep.subr.mxu0 0.0
    %624 = vmatpush1.xpose.msra.mxu0 0.0
    %625 = vmatprep.subr.mxu0 0.0
    %626 = vmatpush1.xpose.msra.mxu0 0.0
    %627 = vmatprep.subr.mxu0 0.0
    %628 = vmatpush1.xpose.msra.mxu0 0.0
    %629 = vmatprep.subr.mxu0 0.0
    %630 = vmatpush1.xpose.msra.mxu0 0.0
    %631 = vmatprep.subr.mxu0 0.0
    %632 = vmatpush1.xpose.msra.mxu0 0.0
    %633 = vmatprep.subr.mxu0 0.0
    %634 = vmatpush1.xpose.msra.mxu0 0.0
    %635 = vmatprep.subr.mxu0 0.0
    %636 = vmatpush1.xpose.msra.mxu0 0.0
    %637 = vmatprep.subr.mxu0 0.0
    %638 = vmatpush1.xpose.msra.mxu0 0.0
    %639 = vmatprep.subr.mxu0 0.0
    %640 = vmatpush1.xpose.msra.mxu0 0.0
    %641 = vmatprep.subr.mxu0 0.0
    %642 = vmatpush1.xpose.msra.mxu0 0.0
    %643 = vmatprep.subr.mxu0 0.0
    %644 = vmatpush1.xpose.msra.mxu0 0.0
    %645 = vmatprep.subr.mxu0 0.0
    %646 = vmatpush1.xpose.msra.mxu0 0.0
    %647 = vmatprep.subr.mxu0 0.0
    %648 = vmatpush1.xpose.msra.mxu0 0.0
    %649 = vmatprep.subr.mxu0 0.0
    %650 = vmatpush1.xpose.msra.mxu0 0.0
    %651 = vmatprep.subr.mxu0 0.0
    %652 = vmatpush1.xpose.msra.mxu0 0.0
    %653 = vmatprep.subr.mxu0 0.0
    %654 = vmatpush1.xpose.msra.mxu0 0.0
    %655 = vmatprep.subr.mxu0 0.0
    %656 = vmatpush1.xpose.msra.mxu0 0.0
    %657 = vmatprep.subr.mxu0 0.0
    %658 = vmatpush1.xpose.msra.mxu0 0.0
    %659 = vmatprep.subr.mxu0 0.0
    %660 = vmatpush1.xpose.msra.mxu0 0.0
    %661 = vmatprep.subr.mxu0 0.0
    %662 = vmatpush1.xpose.msra.mxu0 0.0
    %663 = vmatprep.subr.mxu0 0.0
    %664 = vmatpush1.xpose.msra.mxu0 0.0
    %665 = vmatprep.subr.mxu0 0.0
    %666 = vmatpush1.xpose.msra.mxu0 0.0
    %667 = vmatprep.subr.mxu0 0.0
    %668 = vmatpush1.xpose.msra.mxu0 0.0
    %669 = vmatprep.subr.mxu0 0.0
    %670 = vmatpush1.xpose.msra.mxu0 0.0
    %671 = vmatprep.mubr.f32.mxu0 %v297
    %672 = vmatmul.mubr.f32.gmra.mrb[0].mxu0 %v296
    %v673 = vpop.f32.mrb[0].mxu0
    %v674 = vadd.f32 %v604, %v673
    %v675 = vpop.f32.mrb[0].mxu0
    %676 = vdwg.mxu0
    %677 = vmatprep.subr.mxu0 %v315
    %678 = vmatpush1.xpose.msra.mxu0 %v314
    %679 = vmatprep.subr.mxu0 0.0
    %680 = vmatpush1.xpose.msra.mxu0 0.0
    %681 = vmatprep.subr.mxu0 0.0
    %682 = vmatpush1.xpose.msra.mxu0 0.0
    %683 = vmatprep.subr.mxu0 0.0
    %684 = vmatpush1.xpose.msra.mxu0 0.0
    %685 = vmatprep.subr.mxu0 0.0
    %686 = vmatpush1.xpose.msra.mxu0 0.0
    %687 = vmatprep.subr.mxu0 0.0
    %688 = vmatpush1.xpose.msra.mxu0 0.0
    %689 = vmatprep.subr.mxu0 0.0
    %690 = vmatpush1.xpose.msra.mxu0 0.0
    %691 = vmatprep.subr.mxu0 0.0
    %692 = vmatpush1.xpose.msra.mxu0 0.0
    %693 = vmatprep.subr.mxu0 0.0
    %694 = vmatpush1.xpose.msra.mxu0 0.0
    %695 = vmatprep.subr.mxu0 0.0
    %696 = vmatpush1.xpose.msra.mxu0 0.0
    %697 = vmatprep.subr.mxu0 0.0
    %698 = vmatpush1.xpose.msra.mxu0 0.0
    %699 = vmatprep.subr.mxu0 0.0
    %700 = vmatpush1.xpose.msra.mxu0 0.0
    %701 = vmatprep.subr.mxu0 0.0
    %702 = vmatpush1.xpose.msra.mxu0 0.0
    %703 = vmatprep.subr.mxu0 0.0
    %704 = vmatpush1.xpose.msra.mxu0 0.0
    %705 = vmatprep.subr.mxu0 0.0
    %706 = vmatpush1.xpose.msra.mxu0 0.0
    %707 = vmatprep.subr.mxu0 0.0
    %708 = vmatpush1.xpose.msra.mxu0 0.0
    %709 = vmatprep.subr.mxu0 0.0
    %710 = vmatpush1.xpose.msra.mxu0 0.0
    %711 = vmatprep.subr.mxu0 0.0
    %712 = vmatpush1.xpose.msra.mxu0 0.0
    %713 = vmatprep.subr.mxu0 0.0
    %714 = vmatpush1.xpose.msra.mxu0 0.0
    %715 = vmatprep.subr.mxu0 0.0
    %716 = vmatpush1.xpose.msra.mxu0 0.0
    %717 = vmatprep.subr.mxu0 0.0
    %718 = vmatpush1.xpose.msra.mxu0 0.0
    %719 = vmatprep.subr.mxu0 0.0
    %720 = vmatpush1.xpose.msra.mxu0 0.0
    %721 = vmatprep.subr.mxu0 0.0
    %722 = vmatpush1.xpose.msra.mxu0 0.0
    %723 = vmatprep.subr.mxu0 0.0
    %724 = vmatpush1.xpose.msra.mxu0 0.0
    %725 = vmatprep.subr.mxu0 0.0
    %726 = vmatpush1.xpose.msra.mxu0 0.0
    %727 = vmatprep.subr.mxu0 0.0
    %728 = vmatpush1.xpose.msra.mxu0 0.0
    %729 = vmatprep.subr.mxu0 0.0
    %730 = vmatpush1.xpose.msra.mxu0 0.0
    %731 = vmatprep.subr.mxu0 0.0
    %732 = vmatpush1.xpose.msra.mxu0 0.0
    %733 = vmatprep.subr.mxu0 0.0
    %734 = vmatpush1.xpose.msra.mxu0 0.0
    %735 = vmatprep.subr.mxu0 0.0
    %736 = vmatpush1.xpose.msra.mxu0 0.0
    %737 = vmatprep.subr.mxu0 0.0
    %738 = vmatpush1.xpose.msra.mxu0 0.0
    %739 = vmatprep.subr.mxu0 0.0
    %740 = vmatpush1.xpose.msra.mxu0 0.0
    %741 = vmatprep.mubr.f32.mxu0 %v299
    %742 = vmatmul.mubr.f32.gmra.mrb[0].mxu0 %v298
    %v743 = vpop.f32.mrb[0].mxu0
    %v744 = vadd.f32 %v674, %v743
    %v745 = vpop.f32.mrb[0].mxu0
    %746 = vdwg.mxu0
    %747 = vmatprep.subr.mxu0 %v317
    %748 = vmatpush1.xpose.msra.mxu0 %v316
    %749 = vmatprep.subr.mxu0 0.0
    %750 = vmatpush1.xpose.msra.mxu0 0.0
    %751 = vmatprep.subr.mxu0 0.0
    %752 = vmatpush1.xpose.msra.mxu0 0.0
    %753 = vmatprep.subr.mxu0 0.0
    %754 = vmatpush1.xpose.msra.mxu0 0.0
    %755 = vmatprep.subr.mxu0 0.0
    %756 = vmatpush1.xpose.msra.mxu0 0.0
    %757 = vmatprep.subr.mxu0 0.0
    %758 = vmatpush1.xpose.msra.mxu0 0.0
    %759 = vmatprep.subr.mxu0 0.0
    %760 = vmatpush1.xpose.msra.mxu0 0.0
    %761 = vmatprep.subr.mxu0 0.0
    %762 = vmatpush1.xpose.msra.mxu0 0.0
    %763 = vmatprep.subr.mxu0 0.0
    %764 = vmatpush1.xpose.msra.mxu0 0.0
    %765 = vmatprep.subr.mxu0 0.0
    %766 = vmatpush1.xpose.msra.mxu0 0.0
    %767 = vmatprep.subr.mxu0 0.0
    %768 = vmatpush1.xpose.msra.mxu0 0.0
    %769 = vmatprep.subr.mxu0 0.0
    %770 = vmatpush1.xpose.msra.mxu0 0.0
    %771 = vmatprep.subr.mxu0 0.0
    %772 = vmatpush1.xpose.msra.mxu0 0.0
    %773 = vmatprep.subr.mxu0 0.0
    %774 = vmatpush1.xpose.msra.mxu0 0.0
    %775 = vmatprep.subr.mxu0 0.0
    %776 = vmatpush1.xpose.msra.mxu0 0.0
    %777 = vmatprep.subr.mxu0 0.0
    %778 = vmatpush1.xpose.msra.mxu0 0.0
    %779 = vmatprep.subr.mxu0 0.0
    %780 = vmatpush1.xpose.msra.mxu0 0.0
    %781 = vmatprep.subr.mxu0 0.0
    %782 = vmatpush1.xpose.msra.mxu0 0.0
    %783 = vmatprep.subr.mxu0 0.0
    %784 = vmatpush1.xpose.msra.mxu0 0.0
    %785 = vmatprep.subr.mxu0 0.0
    %786 = vmatpush1.xpose.msra.mxu0 0.0
    %787 = vmatprep.subr.mxu0 0.0
    %788 = vmatpush1.xpose.msra.mxu0 0.0
    %789 = vmatprep.subr.mxu0 0.0
    %790 = vmatpush1.xpose.msra.mxu0 0.0
    %791 = vmatprep.subr.mxu0 0.0
    %792 = vmatpush1.xpose.msra.mxu0 0.0
    %793 = vmatprep.subr.mxu0 0.0
    %794 = vmatpush1.xpose.msra.mxu0 0.0
    %795 = vmatprep.subr.mxu0 0.0
    %796 = vmatpush1.xpose.msra.mxu0 0.0
    %797 = vmatprep.subr.mxu0 0.0
    %798 = vmatpush1.xpose.msra.mxu0 0.0
    %799 = vmatprep.subr.mxu0 0.0
    %800 = vmatpush1.xpose.msra.mxu0 0.0
    %801 = vmatprep.subr.mxu0 0.0
    %802 = vmatpush1.xpose.msra.mxu0 0.0
    %803 = vmatprep.subr.mxu0 0.0
    %804 = vmatpush1.xpose.msra.mxu0 0.0
    %805 = vmatprep.subr.mxu0 0.0
    %806 = vmatpush1.xpose.msra.mxu0 0.0
    %807 = vmatprep.subr.mxu0 0.0
    %808 = vmatpush1.xpose.msra.mxu0 0.0
    %809 = vmatprep.subr.mxu0 0.0
    %810 = vmatpush1.xpose.msra.mxu0 0.0
    %811 = vmatprep.mubr.f32.mxu0 %v301
    %812 = vmatmul.mubr.f32.gmra.mrb[0].mxu0 %v300
    %v813 = vpop.f32.mrb[0].mxu0
    %v814 = vadd.f32 %v744, %v813
    %v815 = vpop.f32.mrb[0].mxu0
    %816 = vdwg.mxu0
    %817 = vmatprep.subr.mxu0 %v319
    %818 = vmatpush1.xpose.msra.mxu0 %v318
    %819 = vmatprep.subr.mxu0 0.0
    %820 = vmatpush1.xpose.msra.mxu0 0.0
    %821 = vmatprep.subr.mxu0 0.0
    %822 = vmatpush1.xpose.msra.mxu0 0.0
    %823 = vmatprep.subr.mxu0 0.0
    %824 = vmatpush1.xpose.msra.mxu0 0.0
    %825 = vmatprep.subr.mxu0 0.0
    %826 = vmatpush1.xpose.msra.mxu0 0.0
    %827 = vmatprep.subr.mxu0 0.0
    %828 = vmatpush1.xpose.msra.mxu0 0.0
    %829 = vmatprep.subr.mxu0 0.0
    %830 = vmatpush1.xpose.msra.mxu0 0.0
    %831 = vmatprep.subr.mxu0 0.0
    %832 = vmatpush1.xpose.msra.mxu0 0.0
    %833 = vmatprep.subr.mxu0 0.0
    %834 = vmatpush1.xpose.msra.mxu0 0.0
    %835 = vmatprep.subr.mxu0 0.0
    %836 = vmatpush1.xpose.msra.mxu0 0.0
    %837 = vmatprep.subr.mxu0 0.0
    %838 = vmatpush1.xpose.msra.mxu0 0.0
    %839 = vmatprep.subr.mxu0 0.0
    %840 = vmatpush1.xpose.msra.mxu0 0.0
    %841 = vmatprep.subr.mxu0 0.0
    %842 = vmatpush1.xpose.msra.mxu0 0.0
    %843 = vmatprep.subr.mxu0 0.0
    %844 = vmatpush1.xpose.msra.mxu0 0.0
    %845 = vmatprep.subr.mxu0 0.0
    %846 = vmatpush1.xpose.msra.mxu0 0.0
    %847 = vmatprep.subr.mxu0 0.0
    %848 = vmatpush1.xpose.msra.mxu0 0.0
    %849 = vmatprep.subr.mxu0 0.0
    %850 = vmatpush1.xpose.msra.mxu0 0.0
    %851 = vmatprep.subr.mxu0 0.0
    %852 = vmatpush1.xpose.msra.mxu0 0.0
    %853 = vmatprep.subr.mxu0 0.0
    %854 = vmatpush1.xpose.msra.mxu0 0.0
    %855 = vmatprep.subr.mxu0 0.0
    %856 = vmatpush1.xpose.msra.mxu0 0.0
    %857 = vmatprep.subr.mxu0 0.0
    %858 = vmatpush1.xpose.msra.mxu0 0.0
    %859 = vmatprep.subr.mxu0 0.0
    %860 = vmatpush1.xpose.msra.mxu0 0.0
    %861 = vmatprep.subr.mxu0 0.0
    %862 = vmatpush1.xpose.msra.mxu0 0.0
    %863 = vmatprep.subr.mxu0 0.0
    %864 = vmatpush1.xpose.msra.mxu0 0.0
    %865 = vmatprep.subr.mxu0 0.0
    %866 = vmatpush1.xpose.msra.mxu0 0.0
    %867 = vmatprep.subr.mxu0 0.0
    %868 = vmatpush1.xpose.msra.mxu0 0.0
    %869 = vmatprep.subr.mxu0 0.0
    %870 = vmatpush1.xpose.msra.mxu0 0.0
    %871 = vmatprep.subr.mxu0 0.0
    %872 = vmatpush1.xpose.msra.mxu0 0.0
    %873 = vmatprep.subr.mxu0 0.0
    %874 = vmatpush1.xpose.msra.mxu0 0.0
    %875 = vmatprep.subr.mxu0 0.0
    %876 = vmatpush1.xpose.msra.mxu0 0.0
    %877 = vmatprep.subr.mxu0 0.0
    %878 = vmatpush1.xpose.msra.mxu0 0.0
    %879 = vmatprep.subr.mxu0 0.0
    %880 = vmatpush1.xpose.msra.mxu0 0.0
    %881 = vmatprep.mubr.f32.mxu0 %v303
    %882 = vmatmul.mubr.f32.gmra.mrb[0].mxu0 %v302
    %v883 = vpop.f32.mrb[0].mxu0
    %v884 = vadd.f32 %v814, %v883
    %v885 = vpop.f32.mrb[0].mxu0
    %886 = vdwg.mxu0
    %vm887 = vcmask 58368
    %888 = vst.msk [vmem:[#allocation2] sm:$0x3] %vm887, %v884
    // Predicated region
    $region22: #{extra_output_extractor.1} parent=1 // pred_check
      _
    $region23: #{extra_output_extractor.1} parent=1 // pred_check_branch
      %890 = sbr.rel (0) target = $region25
    $region24: #{extra_output_extractor.1} parent=1 // pred_region
      %s892 = ssub.s32 32, 32
      %893 = vsyncadd [#allocation3], %s892
      %s895 = sshll.u32 [#allocation2], 4
      %s896 = int_to_ptr.vmem [resolvable:$true] %s895
      %898 = dma.vmem_to_hbm [thread:$0]  %s896, 32, %s5, [#allocation3]
    $region25: #{extra_output_extractor.1} parent=1 // pred_fallthru
      _
    // Predicated region
    $region26: #{extra_output_extractor.1} parent=1 // pred_check
      _
    $region27: #{extra_output_extractor.1} parent=1 // pred_check_branch
      %900 = sbr.rel (0) target = $region29
    $region28: #{extra_output_extractor.1} parent=1 // pred_region
      %901 = dma.done [#allocation3], 32
    $region29: #{extra_output_extractor.1} parent=1 // pred_fallthru
      _
    %902 = vsyncpa [#allocation3], 1

</llo_original>
